<compile_context>
chip_gen: v6e
topology: v6e:2x2x1
jax: 0.10.0
libtpu: 0.0.40
codegen_flags: <defaults>
</compile_context>

<pallas_src>
import jax
import jax.numpy as jnp
import numpy as np
from jax.experimental import pallas as pl
from jax.experimental.pallas import tpu as pltpu

TM_MAX = 256  # max row tile (amortizes per-grid-step overhead, fills MXU rows)
LANE = 128    # lane width; class dim padded to a multiple of this


def _round_up(x, m):
    return ((x + m - 1) // m) * m


def _row_tile(n):
    # Multiple of 8 (sublane), capped at TM_MAX, never larger than needed.
    return max(8, min(TM_MAX, _round_up(n, 8)))


# ----------------------------- Pallas kernels ------------------------------

def _obj_linear_kernel(x_ref, w_ref, b_ref, o_ref):
    # o = x @ W + b   (bf16 operands, f32 MXU accumulate, f32 logits out)
    o_ref[...] = (
        jnp.dot(x_ref[...], w_ref[...], preferred_element_type=jnp.float32)
        + b_ref[...]
    ).astype(o_ref.dtype)


def _rel_fused_kernel(s_ref, ob_ref, u_ref, w_ref, b_ref, o_ref):
    # Pair representation fused with the classifier matmul:
    #   rep = subj * obj + union  (f32 on the VPU — keeps v5e efficient)
    #   o   = rep @ W + b         (bf16 MXU operands, f32 accumulate)
    rep = (s_ref[...].astype(jnp.float32) * ob_ref[...].astype(jnp.float32)
           + u_ref[...].astype(jnp.float32))
    o_ref[...] = (
        jnp.dot(rep.astype(w_ref.dtype), w_ref[...],
                preferred_element_type=jnp.float32)
        + b_ref[...]
    ).astype(o_ref.dtype)


# ----------------------------- wrappers -------------------------------------

def obj_logits_pallas(x_bf16, w_pad_bf16, b_pad_f32, k_real):
    """x_bf16: (N, C) bf16; w_pad: (C, Kp) bf16; b_pad: (1, Kp) f32 -> (N, k_real) f32."""
    n, c = x_bf16.shape
    kp = w_pad_bf16.shape[1]
    tm = _row_tile(n)
    out = pl.pallas_call(
        _obj_linear_kernel,
        out_shape=jax.ShapeDtypeStruct((n, kp), jnp.float32),
        grid=(pl.cdiv(n, tm),),
        in_specs=[
            pl.BlockSpec((tm, c), lambda i: (i, 0)),
            pl.BlockSpec((c, kp), lambda i: (0, 0)),   # weight resident (constant map)
            pl.BlockSpec((1, kp), lambda i: (0, 0)),
        ],
        out_specs=pl.BlockSpec((tm, kp), lambda i: (i, 0)),
        compiler_params=pltpu.CompilerParams(dimension_semantics=("parallel",)),
    )(x_bf16, w_pad_bf16, b_pad_f32)
    return out if kp == k_real else out[:, :k_real]


def rel_logits_pallas(subj_bf16, obj_bf16, union_bf16, w_pad_bf16, b_pad_f32, k_real):
    """All feature inputs (R, C) bf16 -> (R, k_real) f32 relation logits."""
    n, c = subj_bf16.shape
    kp = w_pad_bf16.shape[1]
    tm = _row_tile(n)
    out = pl.pallas_call(
        _rel_fused_kernel,
        out_shape=jax.ShapeDtypeStruct((n, kp), jnp.float32),
        grid=(pl.cdiv(n, tm),),
        in_specs=[
            pl.BlockSpec((tm, c), lambda i: (i, 0)),
            pl.BlockSpec((tm, c), lambda i: (i, 0)),
            pl.BlockSpec((tm, c), lambda i: (i, 0)),
            pl.BlockSpec((c, kp), lambda i: (0, 0)),   # weight resident (constant map)
            pl.BlockSpec((1, kp), lambda i: (0, 0)),
        ],
        out_specs=pl.BlockSpec((tm, kp), lambda i: (i, 0)),
        compiler_params=pltpu.CompilerParams(dimension_semantics=("parallel",)),
    )(subj_bf16, obj_bf16, union_bf16, w_pad_bf16, b_pad_f32)
    return out if kp == k_real else out[:, :k_real]


# --------------------------- predictor module --------------------------------

class ROIRelationPredictor:
    """Concrete minimal ROIRelationPredictor (Pallas-backed forward)."""

    n_dim = 2

    def __init__(self, in_channels, num_obj_classes, num_rel_classes, key):
        k1, k2, k3, k4 = jax.random.split(key, 4)
        scale = 1.0 / jnp.sqrt(in_channels)

        self.num_obj_classes = num_obj_classes
        self.num_rel_classes = num_rel_classes
        kp_obj = _round_up(num_obj_classes, LANE)
        kp_rel = _round_up(num_rel_classes, LANE)

        # Weights stored bf16, zero-padded on the class (lane) axis once at init.
        w_obj = jax.random.normal(k1, (in_channels, num_obj_classes), jnp.float32) * scale
        b_obj = jax.random.normal(k2, (num_obj_classes,), jnp.float32) * 0.01
        w_rel = jax.random.normal(k3, (in_channels, num_rel_classes), jnp.float32) * scale
        b_rel = jax.random.normal(k4, (num_rel_classes,), jnp.float32) * 0.01

        self.w_obj = jnp.zeros((in_channels, kp_obj), jnp.bfloat16
                               ).at[:, :num_obj_classes].set(w_obj.astype(jnp.bfloat16))
        self.b_obj = jnp.zeros((1, kp_obj), jnp.float32).at[0, :num_obj_classes].set(b_obj)
        self.w_rel = jnp.zeros((in_channels, kp_rel), jnp.bfloat16
                               ).at[:, :num_rel_classes].set(w_rel.astype(jnp.bfloat16))
        self.b_rel = jnp.zeros((1, kp_rel), jnp.float32).at[0, :num_rel_classes].set(b_rel)

    @staticmethod
    def supports_attribute_refinement():
        return False

    def forward(self, proposals, rel_pair_idxs, roi_features, union_features):
        """
        proposals       : list[int]             -- number of ROIs per image
        rel_pair_idxs   : list[(R_i, 2) int32]  -- per-image (subj, obj) local indices
        roi_features    : (sum(proposals), C) float32
        union_features  : (sum(R_i), C) float32
        returns (obj_dists, rel_dists, att_dists, add_losses_required)
        """
        num_objs = list(proposals)
        num_rels = [int(p.shape[0]) for p in rel_pair_idxs]
        r_total = sum(num_rels)

        # Cast features to bf16 once (halves kernel-side HBM bytes; MXU runs bf16).
        roi_bf16 = roi_features.astype(jnp.bfloat16)
        union_bf16 = union_features.astype(jnp.bfloat16)

        # --- object classification (Pallas matmul kernel) ---
        obj_logits_all = obj_logits_pallas(
            roi_bf16, self.w_obj, self.b_obj, self.num_obj_classes)

        # --- gather subject / object features per relation pair (JAX glue) ---
        # Single concatenated gather: one jnp.take launch for both subj and obj.
        subj_idx, obj_idx = [], []
        off = 0
        for i, pairs in enumerate(rel_pair_idxs):
            subj_idx.append(pairs[:, 0] + off)
            obj_idx.append(pairs[:, 1] + off)
            off += num_objs[i]
        all_idx = jnp.concatenate(subj_idx + obj_idx, axis=0)
        gathered = jnp.take(roi_bf16, all_idx, axis=0)
        subj_feats = gathered[:r_total]
        obj_feats = gathered[r_total:]

        # --- relation classification (fused Pallas kernel) ---
        rel_logits_all = rel_logits_pallas(
            subj_feats, obj_feats, union_bf16,
            self.w_rel, self.b_rel, self.num_rel_classes)

        # --- split back per image ---
        obj_dists, rel_dists, add_losses_required = [], [], []
        o_off, r_off = 0, 0
        for n_o, n_r in zip(num_objs, num_rels):
            obj_dists.append(obj_logits_all[o_off:o_off + n_o])
            rel_dists.append(rel_logits_all[r_off:r_off + n_r])
            add_losses_required.append(())  # no extra-loss tensors for this predictor
            o_off += n_o
            r_off += n_r

        att_dists = None  # attribute_on = False
        return obj_dists, rel_dists, att_dists, add_losses_required

    def extra_losses(self, add_losses_required, rel_binaries, rel_labels):
        return {}


# ------------------------------- main ----------------------------------------

if __name__ == "__main__":
    key = jax.random.PRNGKey(0)
    k_feat, k_union, k_params = jax.random.split(key, 3)

    in_channels = 128
    num_obj_classes = 32
    num_rel_classes = 16

    # two images, 4 and 6 ROIs
    proposals = [4, 6]
    n_total = sum(proposals)
    rel_pair_idxs = [
        jnp.array([[0, 1], [1, 2], [2, 3]], dtype=jnp.int32),
        jnp.array([[0, 1], [2, 3], [4, 5], [1, 0]], dtype=jnp.int32),
    ]
    r_total = sum(int(p.shape[0]) for p in rel_pair_idxs)

    roi_features = jax.random.normal(k_feat, (n_total, in_channels), jnp.float32)
    union_features = jax.random.normal(k_union, (r_total, in_channels), jnp.float32)

    predictor = ROIRelationPredictor(in_channels, num_obj_classes,
                                     num_rel_classes, k_params)

    obj_dists, rel_dists, att_dists, add_req = predictor.forward(
        proposals, rel_pair_idxs, roi_features, union_features)

    for t in obj_dists + rel_dists:
        jax.block_until_ready(t)

    # shape checks
    assert obj_dists[0].shape == (4, num_obj_classes)
    assert obj_dists[1].shape == (6, num_obj_classes)
    assert rel_dists[0].shape == (3, num_rel_classes)
    assert rel_dists[1].shape == (4, num_rel_classes)
    assert att_dists is None

    # numerical check against a pure-JAX reference that mimics the kernel dtypes
    roi_bf = roi_features.astype(jnp.bfloat16).astype(jnp.float32)
    w_obj_f = predictor.w_obj.astype(jnp.float32)[:, :num_obj_classes]
    b_obj_f = predictor.b_obj[0, :num_obj_classes]
    ref_obj = roi_bf @ w_obj_f + b_obj_f
    got_obj = jnp.concatenate(obj_dists, axis=0)
    np.testing.assert_allclose(np.asarray(got_obj), np.asarray(ref_obj),
                               rtol=5e-2, atol=5e-2)

    off = 0
    s_idx, o_idx = [], []
    for i, pairs in enumerate(rel_pair_idxs):
        s_idx.append(pairs[:, 0] + off)
        o_idx.append(pairs[:, 1] + off)
        off += proposals[i]
    s_idx = jnp.concatenate(s_idx)
    o_idx = jnp.concatenate(o_idx)
    rep = (jnp.take(roi_bf, s_idx, axis=0) * jnp.take(roi_bf, o_idx, axis=0)
           + union_features.astype(jnp.bfloat16).astype(jnp.float32))
    rep = rep.astype(jnp.bfloat16).astype(jnp.float32)
    w_rel_f = predictor.w_rel.astype(jnp.float32)[:, :num_rel_classes]
    b_rel_f = predictor.b_rel[0, :num_rel_classes]
    ref_rel = rep @ w_rel_f + b_rel_f
    got_rel = jnp.concatenate(rel_dists, axis=0)
    np.testing.assert_allclose(np.asarray(got_rel), np.asarray(ref_rel),
                               rtol=5e-2, atol=5e-2)

    print("KERNEL_OK")
</pallas_src>

<mosaic_0001>
module attributes {stable_mosaic.version = 11 : i64} {
  func.func @_obj_linear_kernel(%arg0: i32, %arg1: memref<16x128xbf16, #tpu.memory_space<vmem>>, %arg2: memref<128x128xbf16, #tpu.memory_space<vmem>>, %arg3: memref<1x128xf32, #tpu.memory_space<vmem>>, %arg4: memref<16x128xf32, #tpu.memory_space<vmem>>) attributes {dimension_semantics = [#tpu.dimension_semantics<parallel>], iteration_bounds = array<i64: 1>, scalar_prefetch = 0 : i64, scratch_operands = 0 : i64, tpu.core_type = #tpu.core_type<tc>, window_params = [{transform_indices = @transform_0, window_bounds = array<i64: 16, 128>}, {pipeline_mode = #tpu.pipeline_mode<synchronous>, transform_indices = @transform_1, window_bounds = array<i64: 128, 128>}, {pipeline_mode = #tpu.pipeline_mode<synchronous>, transform_indices = @transform_2, window_bounds = array<i64: 1, 128>}, {transform_indices = @transform_3, window_bounds = array<i64: 16, 128>}]} {
    %c0 = arith.constant 0 : index
    %c0_0 = arith.constant 0 : index
    %0 = vector.load %arg1[%c0, %c0_0] : memref<16x128xbf16, #tpu.memory_space<vmem>>, vector<16x128xbf16>
    %c0_1 = arith.constant 0 : index
    %c0_2 = arith.constant 0 : index
    %1 = vector.load %arg2[%c0_1, %c0_2] : memref<128x128xbf16, #tpu.memory_space<vmem>>, vector<128x128xbf16>
    %cst = arith.constant dense<0.000000e+00> : vector<16x128xf32>
    %2 = tpu.matmul %0, %1, %cst {dimension_numbers = #tpu.dot_dimension_numbers<[1], [0], [0], [1], [0, 0, 1, 1], [], []>} : vector<16x128xbf16>, vector<128x128xbf16>, vector<16x128xf32> -> vector<16x128xf32>
    %c0_3 = arith.constant 0 : index
    %c0_4 = arith.constant 0 : index
    %3 = vector.load %arg3[%c0_3, %c0_4] : memref<1x128xf32, #tpu.memory_space<vmem>>, vector<1x128xf32>
    %4 = vector.broadcast %3 : vector<1x128xf32> to vector<16x128xf32>
    %5 = arith.addf %2, %4 : vector<16x128xf32>
    %c0_5 = arith.constant 0 : index
    %c0_6 = arith.constant 0 : index
    %6 = vector.load %arg4[%c0_5, %c0_6] : memref<16x128xf32, #tpu.memory_space<vmem>>, vector<16x128xf32>
    tpu.vector_store %arg4[%c0_5, %c0_6], %5 {strides = array<i32>} : memref<16x128xf32, #tpu.memory_space<vmem>>, vector<16x128xf32>,
    return
  }
  func.func @transform_0(%arg0: i32) -> (i32, i32) {
    %c0_i32 = arith.constant 0 : i32
    %c0_i32_0 = arith.constant 0 : i32
    return %arg0, %c0_i32 : i32, i32
  }
  func.func @transform_1(%arg0: i32) -> (i32, i32) {
    %c0_i32 = arith.constant 0 : i32
    %c0_i32_0 = arith.constant 0 : i32
    %c0_i32_1 = arith.constant 0 : i32
    return %c0_i32, %c0_i32_0 : i32, i32
  }
  func.func @transform_2(%arg0: i32) -> (i32, i32) {
    %c0_i32 = arith.constant 0 : i32
    %c0_i32_0 = arith.constant 0 : i32
    %c0_i32_1 = arith.constant 0 : i32
    return %c0_i32, %c0_i32_0 : i32, i32
  }
  func.func @transform_3(%arg0: i32) -> (i32, i32) {
    %c0_i32 = arith.constant 0 : i32
    %c0_i32_0 = arith.constant 0 : i32
    return %arg0, %c0_i32 : i32, i32
  }
}

</mosaic_0001>

<llo_original>
// kernel: tpu_custom_call.1
$region0: #{tpu_custom_call.1}
  #allocation0 [shape = 'u32[]', space=smem, size = 0x4, offset = 0x4, fixed_abs, tag = 'smem constant byte address 0x4 - core index']
  #allocation1 [shape = 'u32[144,128]{1,0:T(1,128)}', space=vmem, size = 0x12000, scoped, tag = 'internal scratch']
  %s0 = inlined_call_operand.hbm [shape: bf16[10,128], index: 0, kind: input, shape index: {}]
  %s1 = inlined_call_operand.hbm [shape: bf16[128,128], index: 1, kind: input, shape index: {}]
  %s2 = inlined_call_operand.vmem [shape: f32[1,128], index: 2, kind: input, shape index: {}]
  %s3 = inlined_call_operand.hbm [shape: f32[10,128], index: 3, kind: output, shape index: {}]
  %s4 = sld [smem:[#allocation0]]
  $region30: #{tpu_custom_call.1} parent=0
    _
  %s6 = ssub.s32 1, %s4
  %s7 = scalar_select 0, %s6, %s4
  $region1: #{tpu_custom_call.1} parent=0
    #allocation2 [shape = 'u8[4096]{0}', space=vmem, size = 0x1000, scoped, tag = 'input window, operand 0, single buffered']
    #allocation3 [shape = 's32[1]{0}', space=sflag, size = 0x4, scoped, tag = 'scoped memory for tpu_custom_call.1']
    #allocation4 [shape = 's32[1]{0}', space=sflag, size = 0x4, scoped, tag = 'scoped memory for tpu_custom_call.1']
    #allocation5 [shape = 'u8[32768]{0}', space=vmem, size = 0x8000, scoped, tag = 'input window, operand 1, single buffered']
    #allocation6 [shape = 's32[1]{0}', space=sflag, size = 0x4, scoped, tag = 'scoped memory for tpu_custom_call.1']
    #allocation7 [shape = 'u8[8192]{0}', space=vmem, size = 0x2000, scoped, tag = 'output window, operand 0, single buffered']
    %8 = vsyncpa [#allocation3], 0
    %9 = vsyncpa [#allocation6], 0
    %10 = vsyncpa [#allocation4], 0
    // Predicated region
    $region2: #{tpu_custom_call.1} parent=1 // pred_check
      _
    $region3: #{tpu_custom_call.1} parent=1 // pred_check_branch
      %12 = sbr.rel (0) target = $region5
    $region4: #{tpu_custom_call.1} parent=1 // pred_region
      %s14 = ssub.s32 128, 128
      %15 = vsyncadd [#allocation3], %s14
      %s16 = sshll.u32 [#allocation2], 4
      %s17 = int_to_ptr.vmem [resolvable:$true] %s16
      %22 = dma.hbm_to_vmem [thread:$0]  %s0, 128, %s17, [#allocation3], 64, 64, 4
    $region5: #{tpu_custom_call.1} parent=1 // pred_fallthru
      _
    // Predicated region
    $region6: #{tpu_custom_call.1} parent=1 // pred_check
      _
    $region7: #{tpu_custom_call.1} parent=1 // pred_check_branch
      %24 = sbr.rel (0) target = $region9
    $region8: #{tpu_custom_call.1} parent=1 // pred_region
      %s26 = ssub.s32 1024, 1024
      %27 = vsyncadd [#allocation6], %s26
      %s28 = sshll.u32 [#allocation5], 4
      %s29 = int_to_ptr.vmem [resolvable:$true] %s28
      %34 = dma.hbm_to_vmem [thread:$0]  %s1, 1024, %s29, [#allocation6], 64, 64, 4
    $region9: #{tpu_custom_call.1} parent=1 // pred_fallthru
      _
    // Predicated region
    $region10: #{tpu_custom_call.1} parent=1 // pred_check
      _
    $region11: #{tpu_custom_call.1} parent=1 // pred_check_branch
      %36 = sbr.rel (0) target = $region13
    $region12: #{tpu_custom_call.1} parent=1 // pred_region
      _
    $region13: #{tpu_custom_call.1} parent=1 // pred_fallthru
      _
    // Predicated region
    $region14: #{tpu_custom_call.1} parent=1 // pred_check
      _
    $region15: #{tpu_custom_call.1} parent=1 // pred_check_branch
      %38 = sbr.rel (0) target = $region17
    $region16: #{tpu_custom_call.1} parent=1 // pred_region
      %39 = dma.done [#allocation3], 128
    $region17: #{tpu_custom_call.1} parent=1 // pred_fallthru
      _
    // Predicated region
    $region18: #{tpu_custom_call.1} parent=1 // pred_check
      _
    $region19: #{tpu_custom_call.1} parent=1 // pred_check_branch
      %41 = sbr.rel (0) target = $region21
    $region20: #{tpu_custom_call.1} parent=1 // pred_region
      %42 = dma.done [#allocation6], 1024
    $region21: #{tpu_custom_call.1} parent=1 // pred_fallthru
      _
    %v44 = vld [vmem:[#allocation2] sm:$0xf]
    %v45 = vld [vmem:[#allocation2 + $0x4] sm:$0xf]
    %v46 = vld [vmem:[#allocation5] sm:$0xf]
    %v47 = vld [vmem:[#allocation5 + $0x4] sm:$0xf]
    %v48 = vld [vmem:[#allocation5 + $0x8] sm:$0xf]
    %v49 = vld [vmem:[#allocation5 + $0xc] sm:$0xf]
    %v50 = vld [vmem:[#allocation5 + $0x10] sm:$0xf]
    %v51 = vld [vmem:[#allocation5 + $0x14] sm:$0xf]
    %v52 = vld [vmem:[#allocation5 + $0x18] sm:$0xf]
    %v53 = vld [vmem:[#allocation5 + $0x1c] sm:$0xf]
    %v54 = vld [vmem:[#allocation5 + $0x20] sm:$0xf]
    %v55 = vld [vmem:[#allocation5 + $0x24] sm:$0xf]
    %v56 = vld [vmem:[#allocation5 + $0x28] sm:$0xf]
    %v57 = vld [vmem:[#allocation5 + $0x2c] sm:$0xf]
    %v58 = vld [vmem:[#allocation5 + $0x30] sm:$0xf]
    %v59 = vld [vmem:[#allocation5 + $0x34] sm:$0xf]
    %v60 = vld [vmem:[#allocation5 + $0x38] sm:$0xf]
    %v61 = vld [vmem:[#allocation5 + $0x3c] sm:$0xf]
    %v62 = vld [vmem:[%s2] sm:$0x1]
    %v64 = vlaneseq
    %v65 = vshrl.u32 %v64, 7
    %v66 = vsub.s32 0, %v65
    %v67 = vrot.slane %v62, %v66
    %v71 = vunpack.c.l.b16 %v44
    %v72 = vunpack.c.l.b16 %v45
    %v73 = vpack.c.b16 %v72, %v71
    %v91 = vunpack.c.l.b16 %v46
    %v92 = vunpack.c.l.b16 %v47
    %v93 = vunpack.c.l.b16 %v48
    %v94 = vunpack.c.l.b16 %v49
    %v95 = vunpack.c.l.b16 %v50
    %v96 = vunpack.c.l.b16 %v51
    %v97 = vunpack.c.l.b16 %v52
    %v98 = vunpack.c.l.b16 %v53
    %v99 = vunpack.c.l.b16 %v54
    %v100 = vunpack.c.l.b16 %v55
    %v101 = vunpack.c.l.b16 %v56
    %v102 = vunpack.c.l.b16 %v57
    %v103 = vunpack.c.l.b16 %v58
    %v104 = vunpack.c.l.b16 %v59
    %v105 = vunpack.c.l.b16 %v60
    %v106 = vunpack.c.l.b16 %v61
    %v107 = vpack.c.b16 %v92, %v91
    %v108 = vpack.c.b16 %v94, %v93
    %v109 = vpack.c.b16 %v96, %v95
    %v110 = vpack.c.b16 %v98, %v97
    %v111 = vpack.c.b16 %v100, %v99
    %v112 = vpack.c.b16 %v102, %v101
    %v113 = vpack.c.b16 %v104, %v103
    %v114 = vpack.c.b16 %v106, %v105
    %123 = vmatprep.subr.bf16.mxu0 0
    %124 = vmatpush1.bf16.msra.mxu0 %v114
    %125 = vmatprep.subr.bf16.mxu0 0
    %126 = vmatpush1.bf16.msra.mxu0 %v113
    %127 = vmatprep.subr.bf16.mxu0 0
    %128 = vmatpush1.bf16.msra.mxu0 %v112
    %129 = vmatprep.subr.bf16.mxu0 0
    %130 = vmatpush1.bf16.msra.mxu0 %v111
    %131 = vmatprep.subr.bf16.mxu0 0
    %132 = vmatpush1.bf16.msra.mxu0 %v110
    %133 = vmatprep.subr.bf16.mxu0 0
    %134 = vmatpush1.bf16.msra.mxu0 %v109
    %135 = vmatprep.subr.bf16.mxu0 0
    %136 = vmatpush1.bf16.msra.mxu0 %v108
    %137 = vmatprep.subr.bf16.mxu0 0
    %138 = vmatpush1.bf16.msra.mxu0 %v107
    %139 = vmatprep.subr.bf16.mxu0 0
    %140 = vmatpush2.bf16.msra.mxu0 0
    %141 = vmatprep.subr.bf16.mxu0 0
    %142 = vmatpush2.bf16.msra.mxu0 0
    %143 = vmatprep.subr.bf16.mxu0 0
    %144 = vmatpush2.bf16.msra.mxu0 0
    %145 = vmatprep.subr.bf16.mxu0 0
    %146 = vmatpush2.bf16.msra.mxu0 0
    %147 = vmatprep.subr.bf16.mxu0 0
    %148 = vmatpush2.bf16.msra.mxu0 0
    %149 = vmatprep.subr.bf16.mxu0 0
    %150 = vmatpush2.bf16.msra.mxu0 0
    %151 = vmatprep.subr.bf16.mxu0 0
    %152 = vmatpush2.bf16.msra.mxu0 0
    %153 = vmatprep.subr.bf16.mxu0 0
    %154 = vmatpush2.bf16.msra.mxu0 0
    %155 = vmatprep.mubr.bf16.mxu0 0
    %156 = vmatmul.mubr.bf16.gmra.mxu0 %v73
    %v157 = vpop.f32.mrf.mxu0
    %v158 = vadd.f32 %v67, %v157
    %v159 = vpop.f32.mrf.mxu0
    %v160 = vpop.f32.mrf.mxu0
    %v161 = vadd.f32 %v67, %v160
    %v162 = vpop.f32.mrf.mxu0
    %163 = vdwg.mxu0
    %164 = vst [vmem:[#allocation7] sm:$0xff] %v158
    %165 = vst [vmem:[#allocation7 + $0x8] sm:$0xff] %v161
    // Predicated region
    $region22: #{tpu_custom_call.1} parent=1 // pred_check
      _
    $region23: #{tpu_custom_call.1} parent=1 // pred_check_branch
      %167 = sbr.rel (0) target = $region25
    $region24: #{tpu_custom_call.1} parent=1 // pred_region
      %s169 = ssub.s32 256, 256
      %170 = vsyncadd [#allocation4], %s169
      %s171 = sshll.u32 [#allocation7], 4
      %s172 = int_to_ptr.vmem [resolvable:$true] %s171
      %177 = dma.vmem_to_hbm [thread:$0]  %s172, 256, %s3, [#allocation4], 128, 128, 8
    $region25: #{tpu_custom_call.1} parent=1 // pred_fallthru
      _
    // Predicated region
    $region26: #{tpu_custom_call.1} parent=1 // pred_check
      _
    $region27: #{tpu_custom_call.1} parent=1 // pred_check_branch
      %179 = sbr.rel (0) target = $region29
    $region28: #{tpu_custom_call.1} parent=1 // pred_region
      %180 = dma.done [#allocation4], 256
    $region29: #{tpu_custom_call.1} parent=1 // pred_fallthru
      _
    %181 = vsyncpa [#allocation3], 1
    %182 = vsyncpa [#allocation6], 1
    %183 = vsyncpa [#allocation4], 1

</llo_original>
